<compile_context>
chip_gen: v5e
topology: v5e:2x2
jax: 0.10.0
libtpu: 0.0.40
codegen_flags: <defaults>
</compile_context>

<pallas_src>
import functools

import jax
import jax.numpy as jnp
from jax.experimental import pallas as pl
from jax.experimental.pallas import tpu as pltpu


def _gsdnef_kernel(x_ref, adj_ref, w_ref, b_ref, beta_ref, out_ref, *, alpha, K):
    x = x_ref[...].astype(jnp.float32)        # [N, C_in]
    adj = adj_ref[...].astype(jnp.float32)    # [N, N]
    bias = b_ref[...].astype(jnp.float32)     # [1, C_pad]
    beta = beta_ref[0, 0]                     # scalar from SMEM

    # x_norm = F.normalize(x, p=2, dim=-1)   (torch eps = 1e-12), f32 elementwise
    sq = jnp.sum(x * x, axis=-1, keepdims=True)
    x_norm = x / jnp.maximum(jnp.sqrt(sq), 1e-12)

    # adj = relu(adj + beta * x_norm @ x_norm.T)
    # NT contraction straight on the MXU (bf16 inputs, f32 accumulation),
    # no explicit transpose materialized.
    xn_bf = x_norm.astype(jnp.bfloat16)
    sim = jax.lax.dot_general(
        xn_bf, xn_bf,
        dimension_numbers=(((1,), (1,)), ((), ())),
        preferred_element_type=jnp.float32)    # [N, N]
    adj = jnp.maximum(adj + beta * sim, 0.0)

    # h = x @ W   (bf16 MXU inputs, f32 accumulation)
    h = jnp.dot(x.astype(jnp.bfloat16), w_ref[...].astype(jnp.bfloat16),
                preferred_element_type=jnp.float32)    # [N, C_pad]

    # Symmetric degree normalization with alpha folded in:
    #   alpha * D^-1/2 A D^-1/2 == (sqrt(alpha)*d) * A * (sqrt(alpha)*d)^T
    deg = jnp.sum(adj, axis=-1, keepdims=True)               # [N, 1]
    dis = jax.lax.rsqrt(jnp.maximum(deg, 1.0)) * (alpha ** 0.5)
    adj_bf = ((dis * adj) * dis.T).astype(jnp.bfloat16)      # [N, N], alpha folded

    # K propagation steps: out = (alpha * adj_norm) @ out + h  (alpha already folded)
    out = h
    for _ in range(K):  # K is a static hyperparameter -> unrolled
        out = jnp.dot(adj_bf, out.astype(jnp.bfloat16),
                      preferred_element_type=jnp.float32) + h

    out_ref[...] = ((1.0 - alpha) * out + bias).astype(out_ref.dtype)


def dense_gsdnef_conv(x, adj, weight, bias, beta, *, alpha, K):
    """Forward of DenseGSDNEFConv. Accepts x:[N,C] / adj:[N,N] or batched [B,...]."""
    squeeze = x.ndim == 2
    if squeeze:
        x = x[None]
        adj = adj[None]
    B, N, C_in = x.shape
    C_out = weight.shape[1]
    if bias is None:
        bias = jnp.zeros((C_out,), jnp.float32)

    # Lane-dense channel padding (zero columns stay exactly zero end-to-end).
    C_pad = ((C_out + 127) // 128) * 128
    w_p = weight if C_pad == C_out else jnp.pad(weight, ((0, 0), (0, C_pad - C_out)))
    b_p = bias.reshape(1, C_out)
    if C_pad != C_out:
        b_p = jnp.pad(b_p, ((0, 0), (0, C_pad - C_out)))
    beta_p = jnp.asarray(beta, jnp.float32).reshape(1, 1)

    # Explicit scoped-VMEM budget: double-buffered per-graph operands + intermediates.
    f32b = 4
    vmem_need = f32b * (
        2 * (N * C_in + N * N + N * C_pad)
        + 3 * N * N + 3 * N * C_pad + 2 * C_in * C_pad
    )
    vmem_limit = int(min(64 * 1024 * 1024, max(32 * 1024 * 1024, 2 * vmem_need)))

    kernel = functools.partial(_gsdnef_kernel, alpha=float(alpha), K=int(K))
    out = pl.pallas_call(
        kernel,
        grid=(B,),
        in_specs=[
            pl.BlockSpec((None, N, C_in), lambda b: (b, 0, 0)),    # x   (per graph)
            pl.BlockSpec((None, N, N), lambda b: (b, 0, 0)),       # adj (per graph)
            pl.BlockSpec((C_in, C_pad), lambda b: (0, 0)),         # weight (shared)
            pl.BlockSpec((1, C_pad), lambda b: (0, 0)),            # bias (shared)
            pl.BlockSpec(memory_space=pltpu.MemorySpace.SMEM),     # beta scalar
        ],
        out_specs=pl.BlockSpec((None, N, C_pad), lambda b: (b, 0, 0)),
        out_shape=jax.ShapeDtypeStruct((B, N, C_pad), jnp.float32),
        compiler_params=pltpu.CompilerParams(
            dimension_semantics=("parallel",),
            vmem_limit_bytes=vmem_limit,
        ),
    )(x, adj, w_p, b_p, beta_p)

    out = out[..., :C_out]
    if squeeze:
        out = out[0]
    return out


# ----------------------------------------------------------------------------
# References (per graph).
# ----------------------------------------------------------------------------
def _reference_module_f32(x, adj, weight, bias, beta, *, alpha, K):
    """Exact f32 replica of the PyTorch module forward."""
    hp = jax.lax.Precision.HIGHEST
    xn = x / jnp.maximum(jnp.sqrt(jnp.sum(x * x, -1, keepdims=True)), 1e-12)
    a = adj + beta[0] * jnp.matmul(xn, xn.T, precision=hp)
    a = jnp.maximum(a, 0.0)
    h = jnp.matmul(x, weight, precision=hp)
    dis = jnp.maximum(a.sum(-1), 1.0) ** -0.5
    a = dis[:, None] * a * dis[None, :]
    out = h
    for _ in range(K):
        out = alpha * jnp.matmul(a, out, precision=hp) + h
    return (1.0 - alpha) * out + bias[None, :]


def _reference_kernel_algo(x, adj, weight, bias, beta, *, alpha, K):
    """Pure-JAX replica of the kernel's algorithm (bf16 MXU inputs, alpha folded)."""
    bf = jnp.bfloat16
    xn = x / jnp.maximum(jnp.sqrt(jnp.sum(x * x, -1, keepdims=True)), 1e-12)
    xnb = xn.astype(bf)
    sim = jax.lax.dot_general(xnb, xnb, (((1,), (1,)), ((), ())),
                              preferred_element_type=jnp.float32)
    a = jnp.maximum(adj + beta[0] * sim, 0.0)
    h = jnp.dot(x.astype(bf), weight.astype(bf), preferred_element_type=jnp.float32)
    dis = jax.lax.rsqrt(jnp.maximum(jnp.sum(a, -1, keepdims=True), 1.0)) * (alpha ** 0.5)
    a = ((dis * a) * dis.T).astype(bf)
    out = h
    for _ in range(K):
        out = jnp.dot(a, out.astype(bf), preferred_element_type=jnp.float32) + h
    return (1.0 - alpha) * out + bias[None, :]


if __name__ == "__main__":
    B, N, C_in, C_out = 4, 64, 32, 32
    alpha, K = 0.1, 3

    key = jax.random.PRNGKey(0)
    kx, kadj, kw = jax.random.split(key, 3)

    x = jax.random.normal(kx, (B, N, C_in), dtype=jnp.float32)
    adj = jax.random.uniform(kadj, (B, N, N), dtype=jnp.float32)

    # Deterministic parameter init (reset_parameters semantics):
    # glorot(weight), zeros(bias), beta = 0.1
    limit = (6.0 / (C_in + C_out)) ** 0.5
    weight = jax.random.uniform(
        kw, (C_in, C_out), minval=-limit, maxval=limit, dtype=jnp.float32
    )
    bias = jnp.zeros((C_out,), dtype=jnp.float32)
    beta = jnp.full((1,), 0.1, dtype=jnp.float32)

    fn = jax.jit(functools.partial(dense_gsdnef_conv, alpha=alpha, K=K))
    out = jax.block_until_ready(fn(x, adj, weight, bias, beta))
    assert out.shape == (B, N, C_out)

    # Single-graph (2-D) path must match the batched result.
    out0 = jax.block_until_ready(fn(x[0], adj[0], weight, bias, beta))
    assert out0.shape == (N, C_out)
    assert jnp.allclose(out0, out[0], atol=1e-5, rtol=1e-5)

    # Tight check vs a pure-JAX replica of the exact kernel algorithm.
    ref_match = jnp.stack([
        _reference_kernel_algo(x[b], adj[b], weight, bias, beta, alpha=alpha, K=K)
        for b in range(B)
    ])
    assert jnp.allclose(out, ref_match, atol=1e-4, rtol=1e-4), float(
        jnp.max(jnp.abs(out - ref_match)))

    # Loose check vs the exact f32 module semantics (bf16 MXU rounding only).
    ref_f32 = jnp.stack([
        _reference_module_f32(x[b], adj[b], weight, bias, beta, alpha=alpha, K=K)
        for b in range(B)
    ])
    assert jnp.allclose(out, ref_f32, atol=5e-2, rtol=5e-2), float(
        jnp.max(jnp.abs(out - ref_f32)))

    print("KERNEL_OK")
</pallas_src>

<mosaic_0001>
module attributes {stable_mosaic.version = 11 : i64} {
  func.func @_gsdnef_kernel(%arg0: i32, %arg1: memref<1x64x32xf32, #tpu.memory_space<vmem>>, %arg2: memref<1x64x64xf32, #tpu.memory_space<vmem>>, %arg3: memref<32x128xf32, #tpu.memory_space<vmem>>, %arg4: memref<1x128xf32, #tpu.memory_space<vmem>>, %arg5: memref<1x1xf32, #tpu.memory_space<smem>>, %arg6: memref<1x64x128xf32, #tpu.memory_space<vmem>>) attributes {dimension_semantics = [#tpu.dimension_semantics<parallel>], iteration_bounds = array<i64: 4>, scalar_prefetch = 0 : i64, scratch_operands = 0 : i64, tpu.core_type = #tpu.core_type<tc>, window_params = [{transform_indices = @transform_0, window_bounds = array<i64: 1, 64, 32>}, {transform_indices = @transform_1, window_bounds = array<i64: 1, 64, 64>}, {pipeline_mode = #tpu.pipeline_mode<synchronous>, transform_indices = @transform_2, window_bounds = array<i64: 32, 128>}, {pipeline_mode = #tpu.pipeline_mode<synchronous>, transform_indices = @transform_3, window_bounds = array<i64: 1, 128>}, {transform_indices = @transform_4, window_bounds = array<i64: 1, 1>}, {transform_indices = @transform_5, window_bounds = array<i64: 1, 64, 128>}]} {
    %c0 = arith.constant 0 : index
    %c0_0 = arith.constant 0 : index
    %c0_1 = arith.constant 0 : index
    %0 = vector.load %arg1[%c0, %c0_0, %c0_1] : memref<1x64x32xf32, #tpu.memory_space<vmem>>, vector<1x64x32xf32>
    %1 = vector.shape_cast %0 : vector<1x64x32xf32> to vector<64x32xf32>
    %c0_2 = arith.constant 0 : index
    %c0_3 = arith.constant 0 : index
    %c0_4 = arith.constant 0 : index
    %2 = vector.load %arg2[%c0_2, %c0_3, %c0_4] : memref<1x64x64xf32, #tpu.memory_space<vmem>>, vector<1x64x64xf32>
    %3 = vector.shape_cast %2 : vector<1x64x64xf32> to vector<64x64xf32>
    %c0_5 = arith.constant 0 : index
    %c0_6 = arith.constant 0 : index
    %4 = vector.load %arg4[%c0_5, %c0_6] : memref<1x128xf32, #tpu.memory_space<vmem>>, vector<1x128xf32>
    %c0_7 = arith.constant 0 : index
    %c0_8 = arith.constant 0 : index
    %5 = memref.load %arg5[%c0_7, %c0_8] : memref<1x1xf32, #tpu.memory_space<smem>>
    %6 = arith.mulf %1, %1 : vector<64x32xf32>
    %cst = arith.constant dense<0.000000e+00> : vector<64xf32>
    %7 = vector.multi_reduction <add>, %6, %cst [1] : vector<64x32xf32> to vector<64xf32>
    %8 = vector.shape_cast %7 : vector<64xf32> to vector<64x1xf32>
    %9 = math.sqrt %8 : vector<64x1xf32>
    %cst_9 = arith.constant 9.99999996E-13 : f32
    %10 = vector.broadcast %cst_9 : f32 to vector<64x1xf32>
    %11 = arith.maximumf %9, %10 : vector<64x1xf32>
    %12 = vector.broadcast %11 : vector<64x1xf32> to vector<64x32xf32>
    %13 = arith.divf %1, %12 : vector<64x32xf32>
    %14 = arith.truncf %13 : vector<64x32xf32> to vector<64x32xbf16>
    %cst_10 = arith.constant dense<0.000000e+00> : vector<64x64xf32>
    %15 = tpu.matmul %14, %14, %cst_10 {dimension_numbers = #tpu.dot_dimension_numbers<[1], [1], [0], [0], [0, 0, 1, 0], [], []>} : vector<64x32xbf16>, vector<64x32xbf16>, vector<64x64xf32> -> vector<64x64xf32>
    %16 = vector.broadcast %5 : f32 to vector<64x64xf32>
    %17 = arith.mulf %16, %15 : vector<64x64xf32>
    %18 = arith.addf %3, %17 : vector<64x64xf32>
    %cst_11 = arith.constant 0.000000e+00 : f32
    %19 = vector.broadcast %cst_11 : f32 to vector<64x64xf32>
    %20 = arith.maximumf %18, %19 : vector<64x64xf32>
    %21 = arith.truncf %1 : vector<64x32xf32> to vector<64x32xbf16>
    %c0_12 = arith.constant 0 : index
    %c0_13 = arith.constant 0 : index
    %22 = vector.load %arg3[%c0_12, %c0_13] : memref<32x128xf32, #tpu.memory_space<vmem>>, vector<32x128xf32>
    %23 = arith.truncf %22 : vector<32x128xf32> to vector<32x128xbf16>
    %cst_14 = arith.constant dense<0.000000e+00> : vector<64x128xf32>
    %24 = tpu.matmul %21, %23, %cst_14 {dimension_numbers = #tpu.dot_dimension_numbers<[1], [0], [0], [1], [0, 0, 1, 1], [], []>} : vector<64x32xbf16>, vector<32x128xbf16>, vector<64x128xf32> -> vector<64x128xf32>
    %cst_15 = arith.constant dense<0.000000e+00> : vector<64xf32>
    %25 = vector.multi_reduction <add>, %20, %cst_15 [1] : vector<64x64xf32> to vector<64xf32>
    %26 = vector.shape_cast %25 : vector<64xf32> to vector<64x1xf32>
    %cst_16 = arith.constant 1.000000e+00 : f32
    %27 = vector.broadcast %cst_16 : f32 to vector<64x1xf32>
    %28 = arith.maximumf %26, %27 : vector<64x1xf32>
    %29 = math.rsqrt %28 : vector<64x1xf32>
    %cst_17 = arith.constant 0.316227764 : f32
    %30 = vector.broadcast %cst_17 : f32 to vector<64x1xf32>
    %31 = arith.mulf %29, %30 : vector<64x1xf32>
    %32 = vector.broadcast %31 : vector<64x1xf32> to vector<64x64xf32>
    %33 = arith.mulf %32, %20 : vector<64x64xf32>
    %34 = tpu.transpose %31, [1, 0] : vector<64x1xf32> -> vector<1x64xf32>
    %35 = vector.broadcast %34 : vector<1x64xf32> to vector<64x64xf32>
    %36 = arith.mulf %33, %35 : vector<64x64xf32>
    %37 = arith.truncf %36 : vector<64x64xf32> to vector<64x64xbf16>
    %38 = arith.truncf %24 : vector<64x128xf32> to vector<64x128xbf16>
    %cst_18 = arith.constant dense<0.000000e+00> : vector<64x128xf32>
    %39 = tpu.matmul %37, %38, %cst_18 {dimension_numbers = #tpu.dot_dimension_numbers<[1], [0], [0], [1], [0, 0, 1, 1], [], []>} : vector<64x64xbf16>, vector<64x128xbf16>, vector<64x128xf32> -> vector<64x128xf32>
    %40 = arith.addf %39, %24 : vector<64x128xf32>
    %41 = arith.truncf %40 : vector<64x128xf32> to vector<64x128xbf16>
    %cst_19 = arith.constant dense<0.000000e+00> : vector<64x128xf32>
    %42 = tpu.matmul %37, %41, %cst_19 {dimension_numbers = #tpu.dot_dimension_numbers<[1], [0], [0], [1], [0, 0, 1, 1], [], []>} : vector<64x64xbf16>, vector<64x128xbf16>, vector<64x128xf32> -> vector<64x128xf32>
    %43 = arith.addf %42, %24 : vector<64x128xf32>
    %44 = arith.truncf %43 : vector<64x128xf32> to vector<64x128xbf16>
    %cst_20 = arith.constant dense<0.000000e+00> : vector<64x128xf32>
    %45 = tpu.matmul %37, %44, %cst_20 {dimension_numbers = #tpu.dot_dimension_numbers<[1], [0], [0], [1], [0, 0, 1, 1], [], []>} : vector<64x64xbf16>, vector<64x128xbf16>, vector<64x128xf32> -> vector<64x128xf32>
    %46 = arith.addf %45, %24 : vector<64x128xf32>
    %cst_21 = arith.constant 0.899999976 : f32
    %47 = vector.broadcast %cst_21 : f32 to vector<64x128xf32>
    %48 = arith.mulf %47, %46 : vector<64x128xf32>
    %49 = vector.broadcast %4 : vector<1x128xf32> to vector<64x128xf32>
    %50 = arith.addf %48, %49 : vector<64x128xf32>
    %c0_22 = arith.constant 0 : index
    %c0_23 = arith.constant 0 : index
    %c0_24 = arith.constant 0 : index
    %51 = vector.load %arg6[%c0_22, %c0_23, %c0_24] : memref<1x64x128xf32, #tpu.memory_space<vmem>>, vector<1x64x128xf32>
    %52 = vector.shape_cast %51 : vector<1x64x128xf32> to vector<64x128xf32>
    %53 = vector.shape_cast %50 : vector<64x128xf32> to vector<1x64x128xf32>
    tpu.vector_store %arg6[%c0_22, %c0_23, %c0_24], %53 {strides = array<i32>} : memref<1x64x128xf32, #tpu.memory_space<vmem>>, vector<1x64x128xf32>,
    return
  }
  func.func @transform_0(%arg0: i32) -> (i32, i32, i32) {
    %c0_i32 = arith.constant 0 : i32
    %c0_i32_0 = arith.constant 0 : i32
    %c0_i32_1 = arith.constant 0 : i32
    return %arg0, %c0_i32, %c0_i32_0 : i32, i32, i32
  }
  func.func @transform_1(%arg0: i32) -> (i32, i32, i32) {
    %c0_i32 = arith.constant 0 : i32
    %c0_i32_0 = arith.constant 0 : i32
    %c0_i32_1 = arith.constant 0 : i32
    return %arg0, %c0_i32, %c0_i32_0 : i32, i32, i32
  }
  func.func @transform_2(%arg0: i32) -> (i32, i32) {
    %c0_i32 = arith.constant 0 : i32
    %c0_i32_0 = arith.constant 0 : i32
    %c0_i32_1 = arith.constant 0 : i32
    return %c0_i32, %c0_i32_0 : i32, i32
  }
  func.func @transform_3(%arg0: i32) -> (i32, i32) {
    %c0_i32 = arith.constant 0 : i32
    %c0_i32_0 = arith.constant 0 : i32
    %c0_i32_1 = arith.constant 0 : i32
    return %c0_i32, %c0_i32_0 : i32, i32
  }
  func.func @transform_4(%arg0: i32) -> (i32, i32) {
    %c0_i32 = arith.constant 0 : i32
    %c0_i32_0 = arith.constant 0 : i32
    %c0_i32_1 = arith.constant 0 : i32
    return %c0_i32, %c0_i32_0 : i32, i32
  }
  func.func @transform_5(%arg0: i32) -> (i32, i32, i32) {
    %c0_i32 = arith.constant 0 : i32
    %c0_i32_0 = arith.constant 0 : i32
    %c0_i32_1 = arith.constant 0 : i32
    return %arg0, %c0_i32, %c0_i32_0 : i32, i32, i32
  }
}

</mosaic_0001>

<llo_original>
// kernel: dense_gsdnef_conv.1
$region0: #{dense_gsdnef_conv.1}
  #allocation0 [shape = 'u32[]', space=smem, size = 0x4, offset = 0x4, fixed_abs, tag = 'smem constant byte address 0x4 - core index']
  #allocation1 [shape = 'u32[72,128]{1,0:T(1,128)}', space=vmem, size = 0x9000, scoped, tag = 'internal scratch']
  #allocation2 [shape = 'f32[1,1]{1,0:T(1,128)S(6)}', space=smem, size = 0x200, scoped, tag = 'scoped memory for dense_gsdnef_conv.1']
  %s0 = inlined_call_operand.vmem [shape: f32[4,64,32], index: 0, kind: input, shape index: {}]
  %s1 = inlined_call_operand.vmem [shape: f32[4,64,64], index: 1, kind: input, shape index: {}]
  %s2 = inlined_call_operand.vmem [shape: f32[32,128], index: 2, kind: input, shape index: {}]
  %s3 = inlined_call_operand.vmem [shape: f32[1,128], index: 3, kind: input, shape index: {}]
  %s4 = inlined_call_operand.<no memory space> [shape: f32[1,1], index: 4, kind: input, shape index: {}]
  %s5 = inlined_call_operand.vmem [shape: f32[4,64,128], index: 5, kind: output, shape index: {}]
  %s6 = sld [smem:[#allocation0]]
  $region53: #{dense_gsdnef_conv.1} parent=0
    _
  %s8 = ssub.s32 1, %s6
  %s9 = scalar_select 0, %s8, %s6
  %10 = sst [smem:[#allocation2]] %s4
  loop: start=0, step=1, limit=6
  $region2: #{dense_gsdnef_conv.1} parent=0 // loop_pre_header
    _
  $region3: #{dense_gsdnef_conv.1} parent=0 // loop_header
    %s12 = sphi 0, %s16
    %p13 = scmp.ge.s32.totalorder %s12, 6
    %s22 = sphi 0, %s24
    %s25 = sphi 0, %s22
    %s26 = sphi 0, %s25
    %s42 = sphi 0, %s26
    %s48 = sphi 0, %s50
    %s51 = sphi 0, %s48
    %s52 = sphi 0, %s51
    %s68 = sphi 0, %s52
    %s72 = sphi 0, %s72
    %s74 = sphi 0, %s72
    %s75 = sphi 0, %s74
    %s89 = sphi 0, %s75
    %s93 = sphi 0, %s93
    %s95 = sphi 0, %s93
    %s96 = sphi 0, %s95
    %s110 = sphi 0, %s96
    %s114 = sphi 0, %s114
    %s116 = sphi 0, %s114
    %s117 = sphi 0, %s116
    %s131 = sphi 0, %s117
    %s137 = sphi 0, %s139
    %s140 = sphi 0, %s137
    %s141 = sphi 0, %s140
    %s157 = sphi 0, %s141
  $region4: #{dense_gsdnef_conv.1} parent=0 // loop_header_branch
    %15 = sbr.rel (%p13) target = $region8
  $region5: #{dense_gsdnef_conv.1} parent=0 // loop_body
    %s17 = ssub.s32 %s12, 1
    %s18 = ssub.s32 %s12, 2
    %s19 = sadd.s32 %s12, 1
    %s20 = ssub.s32 %s12, %s19
    %p21 = scmp.eq.s32.totalorder %s20, 0
    %s23 = sadd.s32 %s22, 1
    %s24 = scalar_select %p21, %s22, %s23
    %p27 = pneg %p21
    %p28 = scmp.eq.s32.totalorder %s12, 3
    %p29 = por %p27, %p28
    %p30 = scmp.ne.s32.totalorder %s22, %s25
    %p31 = scmp.eq.s32.totalorder %s12, 0
    %p32 = por %p30, %p31
    %p33 = scmp.ne.s32.totalorder %s22, %s25
    %p34 = scmp.eq.s32.totalorder %s17, 3
    %p35 = por %p33, %p34
    %p36 = scmp.ne.s32.totalorder %s25, %s26
    %p37 = scmp.eq.s32.totalorder %s17, 0
    %p38 = por %p36, %p37
    %p39 = scmp.ne.s32.totalorder %s25, %s26
    %p40 = scmp.eq.s32.totalorder %s18, 3
    %p41 = por %p39, %p40
    %p43 = scmp.ne.s32.totalorder %s26, %s42
    %p44 = scmp.eq.s32.totalorder %s18, 0
    %p45 = por %p43, %p44
    %s46 = ssub.s32 %s12, %s19
    %p47 = scmp.eq.s32.totalorder %s46, 0
    %s49 = sadd.s32 %s48, 1
    %s50 = scalar_select %p47, %s48, %s49
    %p53 = pneg %p47
    %p54 = scmp.eq.s32.totalorder %s12, 3
    %p55 = por %p53, %p54
    %p56 = scmp.ne.s32.totalorder %s48, %s51
    %p57 = scmp.eq.s32.totalorder %s12, 0
    %p58 = por %p56, %p57
    %p59 = scmp.ne.s32.totalorder %s48, %s51
    %p60 = scmp.eq.s32.totalorder %s17, 3
    %p61 = por %p59, %p60
    %p62 = scmp.ne.s32.totalorder %s51, %s52
    %p63 = scmp.eq.s32.totalorder %s17, 0
    %p64 = por %p62, %p63
    %p65 = scmp.ne.s32.totalorder %s51, %s52
    %p66 = scmp.eq.s32.totalorder %s18, 3
    %p67 = por %p65, %p66
    %p69 = scmp.ne.s32.totalorder %s52, %s68
    %p70 = scmp.eq.s32.totalorder %s18, 0
    %p71 = por %p69, %p70
    %s73 = sadd.s32 %s72, 1
    %p76 = scmp.eq.s32.totalorder %s12, 3
    %p77 = scmp.ne.s32.totalorder %s72, %s74
    %p78 = scmp.eq.s32.totalorder %s12, 0
    %p79 = por %p77, %p78
    %p80 = scmp.ne.s32.totalorder %s72, %s74
    %p81 = scmp.eq.s32.totalorder %s17, 3
    %p82 = por %p80, %p81
    %p83 = scmp.ne.s32.totalorder %s74, %s75
    %p84 = scmp.eq.s32.totalorder %s17, 0
    %p85 = por %p83, %p84
    %p86 = scmp.ne.s32.totalorder %s74, %s75
    %p87 = scmp.eq.s32.totalorder %s18, 3
    %p88 = por %p86, %p87
    %p90 = scmp.ne.s32.totalorder %s75, %s89
    %p91 = scmp.eq.s32.totalorder %s18, 0
    %p92 = por %p90, %p91
    %s94 = sadd.s32 %s93, 1
    %p97 = scmp.eq.s32.totalorder %s12, 3
    %p98 = scmp.ne.s32.totalorder %s93, %s95
    %p99 = scmp.eq.s32.totalorder %s12, 0
    %p100 = por %p98, %p99
    %p101 = scmp.ne.s32.totalorder %s93, %s95
    %p102 = scmp.eq.s32.totalorder %s17, 3
    %p103 = por %p101, %p102
    %p104 = scmp.ne.s32.totalorder %s95, %s96
    %p105 = scmp.eq.s32.totalorder %s17, 0
    %p106 = por %p104, %p105
    %p107 = scmp.ne.s32.totalorder %s95, %s96
    %p108 = scmp.eq.s32.totalorder %s18, 3
    %p109 = por %p107, %p108
    %p111 = scmp.ne.s32.totalorder %s96, %s110
    %p112 = scmp.eq.s32.totalorder %s18, 0
    %p113 = por %p111, %p112
    %s115 = sadd.s32 %s114, 1
    %p118 = scmp.eq.s32.totalorder %s12, 3
    %p119 = scmp.ne.s32.totalorder %s114, %s116
    %p120 = scmp.eq.s32.totalorder %s12, 0
    %p121 = por %p119, %p120
    %p122 = scmp.ne.s32.totalorder %s114, %s116
    %p123 = scmp.eq.s32.totalorder %s17, 3
    %p124 = por %p122, %p123
    %p125 = scmp.ne.s32.totalorder %s116, %s117
    %p126 = scmp.eq.s32.totalorder %s17, 0
    %p127 = por %p125, %p126
    %p128 = scmp.ne.s32.totalorder %s116, %s117
    %p129 = scmp.eq.s32.totalorder %s18, 3
    %p130 = por %p128, %p129
    %p132 = scmp.ne.s32.totalorder %s117, %s131
    %p133 = scmp.eq.s32.totalorder %s18, 0
    %p134 = por %p132, %p133
    %s135 = ssub.s32 %s12, %s19
    %p136 = scmp.eq.s32.totalorder %s135, 0
    %s138 = sadd.s32 %s137, 1
    %s139 = scalar_select %p136, %s137, %s138
    %p142 = pneg %p136
    %p143 = scmp.eq.s32.totalorder %s12, 3
    %p144 = por %p142, %p143
    %p145 = scmp.ne.s32.totalorder %s137, %s140
    %p146 = scmp.eq.s32.totalorder %s12, 0
    %p147 = por %p145, %p146
    %p148 = scmp.ne.s32.totalorder %s137, %s140
    %p149 = scmp.eq.s32.totalorder %s17, 3
    %p150 = por %p148, %p149
    %p151 = scmp.ne.s32.totalorder %s140, %s141
    %p152 = scmp.eq.s32.totalorder %s17, 0
    %p153 = por %p151, %p152
    %p154 = scmp.ne.s32.totalorder %s140, %s141
    %p155 = scmp.eq.s32.totalorder %s18, 3
    %p156 = por %p154, %p155
    %p158 = scmp.ne.s32.totalorder %s141, %s157
    %p159 = scmp.eq.s32.totalorder %s18, 0
    %p160 = por %p158, %p159
    %p161 = scmp.le.s32.totalorder 1, %s12
    %p162 = scmp.lt.s32.totalorder %s12, 5
    %p163 = pnand %p161, %p162
    %p164 = pneg %p163
    // Predicated region
    $region9: #{dense_gsdnef_conv.1} parent=5 // pred_check
      _
    $region10: #{dense_gsdnef_conv.1} parent=5 // pred_check_branch
      %166 = sbr.rel (%p163) target = $region12
    $region11: #{dense_gsdnef_conv.1} parent=5 // pred_region
      %s167 = ssub.s32 %s12, 1
      // Predicated region
      $region13: #{dense_gsdnef_conv.1} parent=11 // pred_check
        %p168 = pneg %p85
      $region14: #{dense_gsdnef_conv.1} parent=11 // pred_check_branch
        %170 = sbr.rel (%p168) target = $region16
      $region15: #{dense_gsdnef_conv.1} parent=11 // pred_region
        _
      $region16: #{dense_gsdnef_conv.1} parent=11 // pred_fallthru
        _
      // Predicated region
      $region17: #{dense_gsdnef_conv.1} parent=11 // pred_check
        %p171 = pneg %p106
      $region18: #{dense_gsdnef_conv.1} parent=11 // pred_check_branch
        %173 = sbr.rel (%p171) target = $region20
      $region19: #{dense_gsdnef_conv.1} parent=11 // pred_region
        _
      $region20: #{dense_gsdnef_conv.1} parent=11 // pred_fallthru
        _
      // Predicated region
      $region21: #{dense_gsdnef_conv.1} parent=11 // pred_check
        %p174 = pneg %p127
      $region22: #{dense_gsdnef_conv.1} parent=11 // pred_check_branch
        %176 = sbr.rel (%p174) target = $region24
      $region23: #{dense_gsdnef_conv.1} parent=11 // pred_region
        _
      $region24: #{dense_gsdnef_conv.1} parent=11 // pred_fallthru
        _
    $region12: #{dense_gsdnef_conv.1} parent=5 // pred_fallthru
      _
    %p177 = scmp.lt.s32.totalorder %s12, 4
    // Predicated region
    $region25: #{dense_gsdnef_conv.1} parent=5 // pred_check
      %p178 = pneg %p177
    $region26: #{dense_gsdnef_conv.1} parent=5 // pred_check_branch
      %180 = sbr.rel (%p178) target = $region28
    $region27: #{dense_gsdnef_conv.1} parent=5 // pred_region
      // Predicated region
      $region29: #{dense_gsdnef_conv.1} parent=27 // pred_check
        %p181 = pneg %p32
      $region30: #{dense_gsdnef_conv.1} parent=27 // pred_check_branch
        %183 = sbr.rel (%p181) target = $region32
      $region31: #{dense_gsdnef_conv.1} parent=27 // pred_region
        %p184 = scmp.lt.s32.totalorder %s12, 3
        %s185 = scalar_select %p184, %s12, 3
        %s186 = smul.addr %s185, 8
        %s187 = smul.addr %s186, 8
        %s188 = scalar_lea.vmem %s0, %s187
      $region32: #{dense_gsdnef_conv.1} parent=27 // pred_fallthru
        _
      // Predicated region
      $region33: #{dense_gsdnef_conv.1} parent=27 // pred_check
        %p189 = pneg %p58
      $region34: #{dense_gsdnef_conv.1} parent=27 // pred_check_branch
        %191 = sbr.rel (%p189) target = $region36
      $region35: #{dense_gsdnef_conv.1} parent=27 // pred_region
        %p192 = scmp.lt.s32.totalorder %s12, 3
        %s193 = scalar_select %p192, %s12, 3
        %s194 = smul.addr %s193, 8
        %s195 = smul.addr %s194, 8
        %s196 = scalar_lea.vmem %s1, %s195
      $region36: #{dense_gsdnef_conv.1} parent=27 // pred_fallthru
        _
    $region28: #{dense_gsdnef_conv.1} parent=5 // pred_fallthru
      _
    %p197 = scmp.le.s32.totalorder 1, %s12
    %p198 = scmp.lt.s32.totalorder %s12, 5
    %p199 = pnand %p197, %p198
    %p200 = pneg %p199
    // Predicated region
    $region37: #{dense_gsdnef_conv.1} parent=5 // pred_check
      _
    $region38: #{dense_gsdnef_conv.1} parent=5 // pred_check_branch
      %202 = sbr.rel (%p199) target = $region40
    $region39: #{dense_gsdnef_conv.1} parent=5 // pred_region
      %s203 = ssub.s32 %s12, 1
      %p204 = scmp.lt.s32.totalorder %s17, 3
      %s205 = scalar_select %p204, %s17, 3
      %s206 = smul.addr %s205, 8
      %s207 = smul.addr %s206, 8
      %s208 = scalar_lea.vmem %s0, %s207
      %p209 = pneg %p38
      %p210 = pneg %p35
      %p211 = scmp.lt.s32.totalorder %s17, 3
      %s212 = scalar_select %p211, %s17, 3
      %s213 = smul.addr %s212, 8
      %s214 = smul.addr %s213, 8
      %s215 = scalar_lea.vmem %s1, %s214
      %p216 = pneg %p64
      %p217 = pneg %p61
      %p218 = pneg %p85
      %p219 = pneg %p82
      %p220 = pneg %p106
      %p221 = pneg %p103
      %p222 = pneg %p127
      %p223 = pneg %p124
      %p224 = pneg %p153
      %p225 = pneg %p150
      %p226 = scmp.lt.s32.totalorder %s17, 3
      %s227 = scalar_select %p226, %s17, 3
      %s228 = smul.addr %s227, 8
      %s229 = smul.addr %s228, 8
      %s230 = scalar_lea.vmem %s5, %s229
      %p231 = scmp.lt.s32.totalorder %s17, 3
      %s232 = scalar_select %p231, %s17, 3
      %s233 = smul.addr %s232, 8
      %s234 = smul.addr %s233, 8
      %s235 = scalar_lea.vmem %s0, %s234
      %p236 = scmp.lt.s32.totalorder %s17, 3
      %s237 = scalar_select %p236, %s17, 3
      %s238 = smul.addr %s237, 8
      %s239 = smul.addr %s238, 8
      %s240 = scalar_lea.vmem %s1, %s239
      %p241 = scmp.lt.s32.totalorder %s17, 3
      %s242 = scalar_select %p241, %s17, 3
      %s243 = smul.addr %s242, 8
      %s244 = smul.addr %s243, 8
      %s245 = scalar_lea.vmem %s5, %s244
      %v247 = vld [vmem:[%s235] sm:$0xff]
      %v248 = vld [vmem:[%s235 + $0x8] sm:$0xff]
      %v249 = vld [vmem:[%s235 + $0x10] sm:$0xff]
      %v250 = vld [vmem:[%s235 + $0x18] sm:$0xff]
      %v251 = vld [vmem:[%s235 + $0x20] sm:$0xff]
      %v252 = vld [vmem:[%s235 + $0x28] sm:$0xff]
      %v253 = vld [vmem:[%s235 + $0x30] sm:$0xff]
      %v254 = vld [vmem:[%s235 + $0x38] sm:$0xff]
      %v255 = vld [vmem:[%s240] sm:$0xff]
      %v256 = vld [vmem:[%s240 + $0x8] sm:$0xff]
      %v257 = vld [vmem:[%s240 + $0x10] sm:$0xff]
      %v258 = vld [vmem:[%s240 + $0x18] sm:$0xff]
      %v259 = vld [vmem:[%s240 + $0x20] sm:$0xff]
      %v260 = vld [vmem:[%s240 + $0x28] sm:$0xff]
      %v261 = vld [vmem:[%s240 + $0x30] sm:$0xff]
      %v262 = vld [vmem:[%s240 + $0x38] sm:$0xff]
      %v263 = vld [vmem:[%s3] sm:$0x1]
      %s264 = sld [smem:[#allocation2]]
      %v265 = vmul.f32 %v247, %v247
      %v266 = vmul.f32 %v248, %v248
      %v267 = vmul.f32 %v249, %v249
      %v268 = vmul.f32 %v250, %v250
      %v269 = vmul.f32 %v251, %v251
      %v270 = vmul.f32 %v252, %v252
      %v271 = vmul.f32 %v253, %v253
      %v272 = vmul.f32 %v254, %v254
      %vm273 = vcmask 261120
      %v274 = vsel %vm273, %v265, 0.0
      %275 = vadd.xlane.f32.xlu0 %v274
      %v276 = vpop.xlane.xlu0 %275
      %v277 = vsel %vm273, %v266, 0.0
      %278 = vadd.xlane.f32.xlu0 %v277
      %v279 = vpop.xlane.xlu0 %278
      %v280 = vsel %vm273, %v267, 0.0
      %281 = vadd.xlane.f32.xlu0 %v280
      %v282 = vpop.xlane.xlu0 %281
      %v283 = vsel %vm273, %v268, 0.0
      %284 = vadd.xlane.f32.xlu0 %v283
      %v285 = vpop.xlane.xlu0 %284
      %v286 = vsel %vm273, %v269, 0.0
      %287 = vadd.xlane.f32.xlu0 %v286
      %v288 = vpop.xlane.xlu0 %287
      %v289 = vsel %vm273, %v270, 0.0
      %290 = vadd.xlane.f32.xlu0 %v289
      %v291 = vpop.xlane.xlu0 %290
      %v292 = vsel %vm273, %v271, 0.0
      %293 = vadd.xlane.f32.xlu0 %v292
      %v294 = vpop.xlane.xlu0 %293
      %v295 = vsel %vm273, %v272, 0.0
      %296 = vadd.xlane.f32.xlu0 %v295
      %v297 = vpop.xlane.xlu0 %296
      %v298 = vrsqrt.pop %v276
      %v299 = vmul.f32 %v298, %v276
      %v300 = vmul.f32 %v299, %v298
      %v301 = vmul.f32 0.5, %v300
      %v302 = vsub.f32 1.5, %v301
      %v303 = vmul.f32 %v298, %v302
      %v304 = vmul.f32 %v276, %v303
      %vm305 = vcmp.eq.f32.partialorder %v276, inf
      %v306 = vsel %vm305, %v276, %v304
      %vm307 = vcmp.eq.f32.partialorder %v276, 0.0
      %v308 = vand.u32 %v276, 2147483648
      %v309 = vsel %vm307, %v308, %v306
      %v310 = vrsqrt.pop %v279
      %v311 = vmul.f32 %v310, %v279
      %v312 = vmul.f32 %v311, %v310
      %v313 = vmul.f32 0.5, %v312
      %v314 = vsub.f32 1.5, %v313
      %v315 = vmul.f32 %v310, %v314
      %v316 = vmul.f32 %v279, %v315
      %vm317 = vcmp.eq.f32.partialorder %v279, inf
      %v318 = vsel %vm317, %v279, %v316
      %vm319 = vcmp.eq.f32.partialorder %v279, 0.0
      %v320 = vand.u32 %v279, 2147483648
      %v321 = vsel %vm319, %v320, %v318
      %v322 = vrsqrt.pop %v282
      %v323 = vmul.f32 %v322, %v282
      %v324 = vmul.f32 %v323, %v322
      %v325 = vmul.f32 0.5, %v324
      %v326 = vsub.f32 1.5, %v325
      %v327 = vmul.f32 %v322, %v326
      %v328 = vmul.f32 %v282, %v327
      %vm329 = vcmp.eq.f32.partialorder %v282, inf
      %v330 = vsel %vm329, %v282, %v328
      %vm331 = vcmp.eq.f32.partialorder %v282, 0.0
      %v332 = vand.u32 %v282, 2147483648
      %v333 = vsel %vm331, %v332, %v330
      %v334 = vrsqrt.pop %v285
      %v335 = vmul.f32 %v334, %v285
      %v336 = vmul.f32 %v335, %v334
      %v337 = vmul.f32 0.5, %v336
      %v338 = vsub.f32 1.5, %v337
      %v339 = vmul.f32 %v334, %v338
      %v340 = vmul.f32 %v285, %v339
      %vm341 = vcmp.eq.f32.partialorder %v285, inf
      %v342 = vsel %vm341, %v285, %v340
      %vm343 = vcmp.eq.f32.partialorder %v285, 0.0
      %v344 = vand.u32 %v285, 2147483648
      %v345 = vsel %vm343, %v344, %v342
      %v346 = vrsqrt.pop %v288
      %v347 = vmul.f32 %v346, %v288
      %v348 = vmul.f32 %v347, %v346
      %v349 = vmul.f32 0.5, %v348
      %v350 = vsub.f32 1.5, %v349
      %v351 = vmul.f32 %v346, %v350
      %v352 = vmul.f32 %v288, %v351
      %vm353 = vcmp.eq.f32.partialorder %v288, inf
      %v354 = vsel %vm353, %v288, %v352
      %vm355 = vcmp.eq.f32.partialorder %v288, 0.0
      %v356 = vand.u32 %v288, 2147483648
      %v357 = vsel %vm355, %v356, %v354
      %v358 = vrsqrt.pop %v291
      %v359 = vmul.f32 %v358, %v291
      %v360 = vmul.f32 %v359, %v358
      %v361 = vmul.f32 0.5, %v360
      %v362 = vsub.f32 1.5, %v361
      %v363 = vmul.f32 %v358, %v362
      %v364 = vmul.f32 %v291, %v363
      %vm365 = vcmp.eq.f32.partialorder %v291, inf
      %v366 = vsel %vm365, %v291, %v364
      %vm367 = vcmp.eq.f32.partialorder %v291, 0.0
      %v368 = vand.u32 %v291, 2147483648
      %v369 = vsel %vm367, %v368, %v366
      %v370 = vrsqrt.pop %v294
      %v371 = vmul.f32 %v370, %v294
      %v372 = vmul.f32 %v371, %v370
      %v373 = vmul.f32 0.5, %v372
      %v374 = vsub.f32 1.5, %v373
      %v375 = vmul.f32 %v370, %v374
      %v376 = vmul.f32 %v294, %v375
      %vm377 = vcmp.eq.f32.partialorder %v294, inf
      %v378 = vsel %vm377, %v294, %v376
      %vm379 = vcmp.eq.f32.partialorder %v294, 0.0
      %v380 = vand.u32 %v294, 2147483648
      %v381 = vsel %vm379, %v380, %v378
      %v382 = vrsqrt.pop %v297
      %v383 = vmul.f32 %v382, %v297
      %v384 = vmul.f32 %v383, %v382
      %v385 = vmul.f32 0.5, %v384
      %v386 = vsub.f32 1.5, %v385
      %v387 = vmul.f32 %v382, %v386
      %v388 = vmul.f32 %v297, %v387
      %vm389 = vcmp.eq.f32.partialorder %v297, inf
      %v390 = vsel %vm389, %v297, %v388
      %vm391 = vcmp.eq.f32.partialorder %v297, 0.0
      %v392 = vand.u32 %v297, 2147483648
      %v393 = vsel %vm391, %v392, %v390
      %v394 = vmax.f32 %v309, 1e-12
      %v395 = vmax.f32 %v321, 1e-12
      %v396 = vmax.f32 %v333, 1e-12
      %v397 = vmax.f32 %v345, 1e-12
      %v398 = vmax.f32 %v357, 1e-12
      %v399 = vmax.f32 %v369, 1e-12
      %v400 = vmax.f32 %v381, 1e-12
      %v401 = vmax.f32 %v393, 1e-12
      %v402 = vrcp.pop %v394
      %v403 = vmul.f32 %v394, %v402
      %v404 = vsub.f32 1.0, %v403
      %v405 = vmul.f32 %v402, %v404
      %v406 = vadd.f32 %v402, %v405
      %vm407 = vweird.f32 %v394
      %vm408 = vweird.f32 %v402
      %vm409 = vmor %vm407, %vm408
      %v410 = vsel %vm409, %v402, %v406
      %v411 = vand.u32 2147483647, %v394
      %vm412 = vcmp.eq.f32.partialorder %v411, 8.507059e+37
      %v413 = vand.u32 %v394, 2147483648
      %v414 = vor.u32 1.1754944e-38, %v413
      %v415 = vsel %vm412, %v414, %v410
      %v416 = vmul.f32 %v247, %v415
      %v417 = vrcp.pop %v395
      %v418 = vmul.f32 %v395, %v417
      %v419 = vsub.f32 1.0, %v418
      %v420 = vmul.f32 %v417, %v419
      %v421 = vadd.f32 %v417, %v420
      %vm422 = vweird.f32 %v395
      %vm423 = vweird.f32 %v417
      %vm424 = vmor %vm422, %vm423
      %v425 = vsel %vm424, %v417, %v421
      %v426 = vand.u32 2147483647, %v395
      %vm427 = vcmp.eq.f32.partialorder %v426, 8.507059e+37
      %v428 = vand.u32 %v395, 2147483648
      %v429 = vor.u32 1.1754944e-38, %v428
      %v430 = vsel %vm427, %v429, %v425
      %v431 = vmul.f32 %v248, %v430
      %v432 = vrcp.pop %v396
      %v433 = vmul.f32 %v396, %v432
      %v434 = vsub.f32 1.0, %v433
      %v435 = vmul.f32 %v432, %v434
      %v436 = vadd.f32 %v432, %v435
      %vm437 = vweird.f32 %v396
      %vm438 = vweird.f32 %v432
      %vm439 = vmor %vm437, %vm438
      %v440 = vsel %vm439, %v432, %v436
      %v441 = vand.u32 2147483647, %v396
      %vm442 = vcmp.eq.f32.partialorder %v441, 8.507059e+37
      %v443 = vand.u32 %v396, 2147483648
      %v444 = vor.u32 1.1754944e-38, %v443
      %v445 = vsel %vm442, %v444, %v440
      %v446 = vmul.f32 %v249, %v445
      %v447 = vrcp.pop %v397
      %v448 = vmul.f32 %v397, %v447
      %v449 = vsub.f32 1.0, %v448
      %v450 = vmul.f32 %v447, %v449
      %v451 = vadd.f32 %v447, %v450
      %vm452 = vweird.f32 %v397
      %vm453 = vweird.f32 %v447
      %vm454 = vmor %vm452, %vm453
      %v455 = vsel %vm454, %v447, %v451
      %v456 = vand.u32 2147483647, %v397
      %vm457 = vcmp.eq.f32.partialorder %v456, 8.507059e+37
      %v458 = vand.u32 %v397, 2147483648
      %v459 = vor.u32 1.1754944e-38, %v458
      %v460 = vsel %vm457, %v459, %v455
      %v461 = vmul.f32 %v250, %v460
      %v462 = vrcp.pop %v398
      %v463 = vmul.f32 %v398, %v462
      %v464 = vsub.f32 1.0, %v463
      %v465 = vmul.f32 %v462, %v464
      %v466 = vadd.f32 %v462, %v465
      %vm467 = vweird.f32 %v398
      %vm468 = vweird.f32 %v462
      %vm469 = vmor %vm467, %vm468
      %v470 = vsel %vm469, %v462, %v466
      %v471 = vand.u32 2147483647, %v398
      %vm472 = vcmp.eq.f32.partialorder %v471, 8.507059e+37
      %v473 = vand.u32 %v398, 2147483648
      %v474 = vor.u32 1.1754944e-38, %v473
      %v475 = vsel %vm472, %v474, %v470
      %v476 = vmul.f32 %v251, %v475
      %v477 = vrcp.pop %v399
      %v478 = vmul.f32 %v399, %v477
      %v479 = vsub.f32 1.0, %v478
      %v480 = vmul.f32 %v477, %v479
      %v481 = vadd.f32 %v477, %v480
      %vm482 = vweird.f32 %v399
      %vm483 = vweird.f32 %v477
      %vm484 = vmor %vm482, %vm483
      %v485 = vsel %vm484, %v477, %v481
      %v486 = vand.u32 2147483647, %v399
      %vm487 = vcmp.eq.f32.partialorder %v486, 8.507059e+37
      %v488 = vand.u32 %v399, 2147483648
      %v489 = vor.u32 1.1754944e-38, %v488
      %v490 = vsel %vm487, %v489, %v485
      %v491 = vmul.f32 %v252, %v490
      %v492 = vrcp.pop %v400
      %v493 = vmul.f32 %v400, %v492
      %v494 = vsub.f32 1.0, %v493
      %v495 = vmul.f32 %v492, %v494
      %v496 = vadd.f32 %v492, %v495
      %vm497 = vweird.f32 %v400
      %vm498 = vweird.f32 %v492
      %vm499 = vmor %vm497, %vm498
      %v500 = vsel %vm499, %v492, %v496
      %v501 = vand.u32 2147483647, %v400
      %vm502 = vcmp.eq.f32.partialorder %v501, 8.507059e+37
      %v503 = vand.u32 %v400, 2147483648
      %v504 = vor.u32 1.1754944e-38, %v503
      %v505 = vsel %vm502, %v504, %v500
      %v506 = vmul.f32 %v253, %v505
      %v507 = vrcp.pop %v401
      %v508 = vmul.f32 %v401, %v507
      %v509 = vsub.f32 1.0, %v508
      %v510 = vmul.f32 %v507, %v509
      %v511 = vadd.f32 %v507, %v510
      %vm512 = vweird.f32 %v401
      %vm513 = vweird.f32 %v507
      %vm514 = vmor %vm512, %vm513
      %v515 = vsel %vm514, %v507, %v511
      %v516 = vand.u32 2147483647, %v401
      %vm517 = vcmp.eq.f32.partialorder %v516, 8.507059e+37
      %v518 = vand.u32 %v401, 2147483648
      %v519 = vor.u32 1.1754944e-38, %v518
      %v520 = vsel %vm517, %v519, %v515
      %v521 = vmul.f32 %v254, %v520
      %v522 = vpack.c.bf16 %v431, %v416
      %v523 = vpack.c.bf16 %v461, %v446
      %v524 = vpack.c.bf16 %v491, %v476
      %v525 = vpack.c.bf16 %v521, %v506
      %v527 = vsel %vm273, %v522, 0
      %v530 = vsel %vm273, %v523, 0
      %v533 = vsel %vm273, %v524, 0
      %v536 = vsel %vm273, %v525, 0
      %538 = vmatpush.bf16.xpose.msra.mxu0 0
      %539 = vmatpush.bf16.xpose.msra.mxu0 0
      %540 = vmatpush.bf16.xpose.msra.mxu0 0
      %541 = vmatpush.bf16.xpose.msra.mxu0 0
      %542 = vmatpush.bf16.xpose.msra.mxu0 %v536
      %543 = vmatpush.bf16.xpose.msra.mxu0 %v533
      %544 = vmatpush.bf16.xpose.msra.mxu0 %v530
      %545 = vmatpush.bf16.xpose.msra.mxu0 %v527
      %546 = vmatmul.bf16.gmra.mxu0 %v527
      %v547 = vpop.f32.mrf.mxu0
      %v548 = vadd.f32 0.0, %v547
      %v549 = vpop.f32.mrf.mxu0
      %v550 = vadd.f32 0.0, %v549
      %551 = vmatmul.bf16.gmra.mxu0 %v530
      %v552 = vpop.f32.mrf.mxu0
      %v553 = vadd.f32 0.0, %v552
      %v554 = vpop.f32.mrf.mxu0
      %v555 = vadd.f32 0.0, %v554
      %556 = vmatmul.bf16.gmra.mxu0 %v533
      %v557 = vpop.f32.mrf.mxu0
      %v558 = vadd.f32 0.0, %v557
      %v559 = vpop.f32.mrf.mxu0
      %v560 = vadd.f32 0.0, %v559
      %561 = vmatmul.bf16.gmra.mxu0 %v536
      %v562 = vpop.f32.mrf.mxu0
      %v563 = vadd.f32 0.0, %v562
      %v564 = vpop.f32.mrf.mxu0
      %v565 = vadd.f32 0.0, %v564
      %566 = vdwg.mxu0
      %v567 = vstv %s264
      %v568 = vmul.f32 %v567, %v548
      %v569 = vmul.f32 %v567, %v550
      %v570 = vmul.f32 %v567, %v553
      %v571 = vmul.f32 %v567, %v555
      %v572 = vmul.f32 %v567, %v558
      %v573 = vmul.f32 %v567, %v560
      %v574 = vmul.f32 %v567, %v563
      %v575 = vmul.f32 %v567, %v565
      %v576 = vadd.f32 %v255, %v568
      %v577 = vadd.f32 %v256, %v569
      %v578 = vadd.f32 %v257, %v570
      %v579 = vadd.f32 %v258, %v571
      %v580 = vadd.f32 %v259, %v572
      %v581 = vadd.f32 %v260, %v573
      %v582 = vadd.f32 %v261, %v574
      %v583 = vadd.f32 %v262, %v575
      %v584 = vmax.f32 %v576, 0.0
      %v585 = vmax.f32 %v577, 0.0
      %v586 = vmax.f32 %v578, 0.0
      %v587 = vmax.f32 %v579, 0.0
      %v588 = vmax.f32 %v580, 0.0
      %v589 = vmax.f32 %v581, 0.0
      %v590 = vmax.f32 %v582, 0.0
      %v591 = vmax.f32 %v583, 0.0
      %v592 = vpack.c.bf16 %v248, %v247
      %v593 = vpack.c.bf16 %v250, %v249
      %v594 = vpack.c.bf16 %v252, %v251
      %v595 = vpack.c.bf16 %v254, %v253
      %v596 = vld [vmem:[%s2] sm:$0xff]
      %v597 = vld [vmem:[%s2 + $0x8] sm:$0xff]
      %v598 = vld [vmem:[%s2 + $0x10] sm:$0xff]
      %v599 = vld [vmem:[%s2 + $0x18] sm:$0xff]
      %v600 = vpack.c.bf16 %v597, %v596
      %v601 = vpack.c.bf16 %v599, %v598
      %v603 = vsel %vm273, %v592, 0
      %v606 = vsel %vm273, %v593, 0
      %v609 = vsel %vm273, %v594, 0
      %v612 = vsel %vm273, %v595, 0
      %614 = vmatpush.bf16.msra.mxu0 0
      %615 = vmatpush.bf16.msra.mxu0 0
      %616 = vmatpush.bf16.msra.mxu0 0
      %617 = vmatpush.bf16.msra.mxu0 0
      %618 = vmatpush.bf16.msra.mxu0 0
      %619 = vmatpush.bf16.msra.mxu0 0
      %620 = vmatpush.bf16.msra.mxu0 %v601
      %621 = vmatpush.bf16.msra.mxu0 %v600
      %622 = vmatmul.bf16.gmra.mxu0 %v603
      %v623 = vpop.f32.mrf.mxu0
      %v624 = vadd.f32 0.0, %v623
      %v625 = vpop.f32.mrf.mxu0
      %v626 = vadd.f32 0.0, %v625
      %627 = vmatmul.bf16.gmra.mxu0 %v606
      %v628 = vpop.f32.mrf.mxu0
      %v629 = vadd.f32 0.0, %v628
      %v630 = vpop.f32.mrf.mxu0
      %v631 = vadd.f32 0.0, %v630
      %632 = vmatmul.bf16.gmra.mxu0 %v609
      %v633 = vpop.f32.mrf.mxu0
      %v634 = vadd.f32 0.0, %v633
      %v635 = vpop.f32.mrf.mxu0
      %v636 = vadd.f32 0.0, %v635
      %637 = vmatmul.bf16.gmra.mxu0 %v612
      %v638 = vpop.f32.mrf.mxu0
      %v639 = vadd.f32 0.0, %v638
      %v640 = vpop.f32.mrf.mxu0
      %v641 = vadd.f32 0.0, %v640
      %642 = vdwg.mxu0
      %vm643 = vcmask 523264
      %v644 = vsel %vm643, %v584, 0.0
      %645 = vadd.xlane.f32.xlu0 %v644
      %v646 = vpop.xlane.xlu0 %645
      %v647 = vsel %vm643, %v585, 0.0
      %648 = vadd.xlane.f32.xlu0 %v647
      %v649 = vpop.xlane.xlu0 %648
      %v650 = vsel %vm643, %v586, 0.0
      %651 = vadd.xlane.f32.xlu0 %v650
      %v652 = vpop.xlane.xlu0 %651
      %v653 = vsel %vm643, %v587, 0.0
      %654 = vadd.xlane.f32.xlu0 %v653
      %v655 = vpop.xlane.xlu0 %654
      %v656 = vsel %vm643, %v588, 0.0
      %657 = vadd.xlane.f32.xlu0 %v656
      %v658 = vpop.xlane.xlu0 %657
      %v659 = vsel %vm643, %v589, 0.0
      %660 = vadd.xlane.f32.xlu0 %v659
      %v661 = vpop.xlane.xlu0 %660
      %v662 = vsel %vm643, %v590, 0.0
      %663 = vadd.xlane.f32.xlu0 %v662
      %v664 = vpop.xlane.xlu0 %663
      %v665 = vsel %vm643, %v591, 0.0
      %666 = vadd.xlane.f32.xlu0 %v665
      %v667 = vpop.xlane.xlu0 %666
      %v668 = vmax.f32 %v646, 1.0
      %v669 = vmax.f32 %v649, 1.0
      %v670 = vmax.f32 %v652, 1.0
      %v671 = vmax.f32 %v655, 1.0
      %v672 = vmax.f32 %v658, 1.0
      %v673 = vmax.f32 %v661, 1.0
      %v674 = vmax.f32 %v664, 1.0
      %v675 = vmax.f32 %v667, 1.0
      %v676 = vrsqrt.pop %v668
      %v677 = vmul.f32 %v676, %v668
      %v678 = vmul.f32 %v677, %v676
      %v679 = vmul.f32 0.5, %v678
      %v680 = vsub.f32 1.5, %v679
      %v681 = vmul.f32 %v676, %v680
      %vm682 = vweird.f32 %v668
      %vm683 = vweird.f32 %v676
      %vm684 = vmor %vm682, %vm683
      %v685 = vsel %vm684, %v676, %v681
      %v686 = vrsqrt.pop %v669
      %v687 = vmul.f32 %v686, %v669
      %v688 = vmul.f32 %v687, %v686
      %v689 = vmul.f32 0.5, %v688
      %v690 = vsub.f32 1.5, %v689
      %v691 = vmul.f32 %v686, %v690
      %vm692 = vweird.f32 %v669
      %vm693 = vweird.f32 %v686
      %vm694 = vmor %vm692, %vm693
      %v695 = vsel %vm694, %v686, %v691
      %v696 = vrsqrt.pop %v670
      %v697 = vmul.f32 %v696, %v670
      %v698 = vmul.f32 %v697, %v696
      %v699 = vmul.f32 0.5, %v698
      %v700 = vsub.f32 1.5, %v699
      %v701 = vmul.f32 %v696, %v700
      %vm702 = vweird.f32 %v670
      %vm703 = vweird.f32 %v696
      %vm704 = vmor %vm702, %vm703
      %v705 = vsel %vm704, %v696, %v701
      %v706 = vrsqrt.pop %v671
      %v707 = vmul.f32 %v706, %v671
      %v708 = vmul.f32 %v707, %v706
      %v709 = vmul.f32 0.5, %v708
      %v710 = vsub.f32 1.5, %v709
      %v711 = vmul.f32 %v706, %v710
      %vm712 = vweird.f32 %v671
      %vm713 = vweird.f32 %v706
      %vm714 = vmor %vm712, %vm713
      %v715 = vsel %vm714, %v706, %v711
      %v716 = vrsqrt.pop %v672
      %v717 = vmul.f32 %v716, %v672
      %v718 = vmul.f32 %v717, %v716
      %v719 = vmul.f32 0.5, %v718
      %v720 = vsub.f32 1.5, %v719
      %v721 = vmul.f32 %v716, %v720
      %vm722 = vweird.f32 %v672
      %vm723 = vweird.f32 %v716
      %vm724 = vmor %vm722, %vm723
      %v725 = vsel %vm724, %v716, %v721
      %v726 = vrsqrt.pop %v673
      %v727 = vmul.f32 %v726, %v673
      %v728 = vmul.f32 %v727, %v726
      %v729 = vmul.f32 0.5, %v728
      %v730 = vsub.f32 1.5, %v729
      %v731 = vmul.f32 %v726, %v730
      %vm732 = vweird.f32 %v673
      %vm733 = vweird.f32 %v726
      %vm734 = vmor %vm732, %vm733
      %v735 = vsel %vm734, %v726, %v731
      %v736 = vrsqrt.pop %v674
      %v737 = vmul.f32 %v736, %v674
      %v738 = vmul.f32 %v737, %v736
      %v739 = vmul.f32 0.5, %v738
      %v740 = vsub.f32 1.5, %v739
      %v741 = vmul.f32 %v736, %v740
      %vm742 = vweird.f32 %v674
      %vm743 = vweird.f32 %v736
      %vm744 = vmor %vm742, %vm743
      %v745 = vsel %vm744, %v736, %v741
      %v746 = vrsqrt.pop %v675
      %v747 = vmul.f32 %v746, %v675
      %v748 = vmul.f32 %v747, %v746
      %v749 = vmul.f32 0.5, %v748
      %v750 = vsub.f32 1.5, %v749
      %v751 = vmul.f32 %v746, %v750
      %vm752 = vweird.f32 %v675
      %vm753 = vweird.f32 %v746
      %vm754 = vmor %vm752, %vm753
      %v755 = vsel %vm754, %v746, %v751
      %v756 = vmul.f32 %v685, 0.31622776
      %v757 = vmul.f32 %v695, 0.31622776
      %v758 = vmul.f32 %v705, 0.31622776
      %v759 = vmul.f32 %v715, 0.31622776
      %v760 = vmul.f32 %v725, 0.31622776
      %v761 = vmul.f32 %v735, 0.31622776
      %v762 = vmul.f32 %v745, 0.31622776
      %v763 = vmul.f32 %v755, 0.31622776
      %v764 = vmul.f32 %v756, %v584
      %v765 = vmul.f32 %v757, %v585
      %v766 = vmul.f32 %v758, %v586
      %v767 = vmul.f32 %v759, %v587
      %v768 = vmul.f32 %v760, %v588
      %v769 = vmul.f32 %v761, %v589
      %v770 = vmul.f32 %v762, %v590
      %v771 = vmul.f32 %v763, %v591
      %772 = vxpose.xlu0.b32.start [1/16] %v756, 128
      %773 = vxpose.xlu0.b32.cont [2/16] %v757, 128
      %774 = vxpose.xlu0.b32.cont [3/16] %v758, 128
      %775 = vxpose.xlu0.b32.cont [4/16] %v759, 128
      %776 = vxpose.xlu0.b32.cont [5/16] %v760, 128
      %777 = vxpose.xlu0.b32.cont [6/16] %v761, 128
      %778 = vxpose.xlu0.b32.cont [7/16] %v762, 128
      %779 = vxpose.xlu0.b32.cont [8/16] %v763, 128
      %780 = vxpose.xlu0.b32.cont [9/16] 0.0, 128
      %781 = vxpose.xlu0.b32.cont [10/16] 0.0, 128
      %782 = vxpose.xlu0.b32.cont [11/16] 0.0, 128
      %783 = vxpose.xlu0.b32.cont [12/16] 0.0, 128
      %784 = vxpose.xlu0.b32.cont [13/16] 0.0, 128
      %785 = vxpose.xlu0.b32.cont [14/16] 0.0, 128
      %786 = vxpose.xlu0.b32.cont [15/16] 0.0, 128
      %787 = vxpose.xlu0.b32.end [16/16] 0.0, 128
      %v788 = vpop.trf.xlu0
      %v789 = vpop.trf.xlu0
      %v790 = vpop.trf.xlu0
      %v791 = vpop.trf.xlu0
      %v792 = vpop.trf.xlu0
      %v793 = vpop.trf.xlu0
      %v794 = vpop.trf.xlu0
      %v795 = vpop.trf.xlu0
      %v796 = vpop.trf.xlu0
      %v797 = vpop.trf.xlu0
      %v798 = vpop.trf.xlu0
      %v799 = vpop.trf.xlu0
      %v800 = vpop.trf.xlu0
      %v801 = vpop.trf.xlu0
      %v802 = vpop.trf.xlu0
      %v803 = vpop.trf.xlu0
      %v804 = vperm.slane %v788, 0
      %v805 = vmul.f32 %v764, %v804
      %v806 = vmul.f32 %v765, %v804
      %v807 = vmul.f32 %v766, %v804
      %v808 = vmul.f32 %v767, %v804
      %v809 = vmul.f32 %v768, %v804
      %v810 = vmul.f32 %v769, %v804
      %v811 = vmul.f32 %v770, %v804
      %v812 = vmul.f32 %v771, %v804
      %v813 = vpack.c.bf16 %v806, %v805
      %v814 = vpack.c.bf16 %v808, %v807
      %v815 = vpack.c.bf16 %v810, %v809
      %v816 = vpack.c.bf16 %v812, %v811
      %v817 = vpack.c.bf16 %v626, %v624
      %v818 = vpack.c.bf16 %v631, %v629
      %v819 = vpack.c.bf16 %v636, %v634
      %v820 = vpack.c.bf16 %v641, %v639
      %v822 = vsel %vm643, %v813, 0
      %v825 = vsel %vm643, %v814, 0
      %v828 = vsel %vm643, %v815, 0
      %v831 = vsel %vm643, %v816, 0
      %833 = vmatpush.bf16.msra.mxu0 0
      %834 = vmatpush.bf16.msra.mxu0 0
      %835 = vmatpush.bf16.msra.mxu0 0
      %836 = vmatpush.bf16.msra.mxu0 0
      %837 = vmatpush.bf16.msra.mxu0 %v820
      %838 = vmatpush.bf16.msra.mxu0 %v819
      %839 = vmatpush.bf16.msra.mxu0 %v818
      %840 = vmatpush.bf16.msra.mxu0 %v817
      %841 = vmatmul.bf16.gmra.mxu0 %v822
      %v842 = vpop.f32.mrf.mxu0
      %v843 = vadd.f32 %v624, %v842
      %v844 = vpop.f32.mrf.mxu0
      %v845 = vadd.f32 %v626, %v844
      %846 = vmatmul.bf16.gmra.mxu0 %v825
      %v847 = vpop.f32.mrf.mxu0
      %v848 = vadd.f32 %v629, %v847
      %v849 = vpop.f32.mrf.mxu0
      %v850 = vadd.f32 %v631, %v849
      %851 = vmatmul.bf16.gmra.mxu0 %v828
      %v852 = vpop.f32.mrf.mxu0
      %v853 = vadd.f32 %v634, %v852
      %v854 = vpop.f32.mrf.mxu0
      %v855 = vadd.f32 %v636, %v854
      %856 = vmatmul.bf16.gmra.mxu0 %v831
      %v857 = vpop.f32.mrf.mxu0
      %v858 = vadd.f32 %v639, %v857
      %v859 = vpop.f32.mrf.mxu0
      %v860 = vadd.f32 %v641, %v859
      %861 = vdwg.mxu0
      %v862 = vpack.c.bf16 %v845, %v843
      %v863 = vpack.c.bf16 %v850, %v848
      %v864 = vpack.c.bf16 %v855, %v853
      %v865 = vpack.c.bf16 %v860, %v858
      %866 = vmatpush.bf16.msra.mxu0 0
      %867 = vmatpush.bf16.msra.mxu0 0
      %868 = vmatpush.bf16.msra.mxu0 0
      %869 = vmatpush.bf16.msra.mxu0 0
      %870 = vmatpush.bf16.msra.mxu0 %v865
      %871 = vmatpush.bf16.msra.mxu0 %v864
      %872 = vmatpush.bf16.msra.mxu0 %v863
      %873 = vmatpush.bf16.msra.mxu0 %v862
      %874 = vmatmul.bf16.gmra.mxu0 %v822
      %v875 = vpop.f32.mrf.mxu0
      %v876 = vadd.f32 %v624, %v875
      %v877 = vpop.f32.mrf.mxu0
      %v878 = vadd.f32 %v626, %v877
      %879 = vmatmul.bf16.gmra.mxu0 %v825
      %v880 = vpop.f32.mrf.mxu0
      %v881 = vadd.f32 %v629, %v880
      %v882 = vpop.f32.mrf.mxu0
      %v883 = vadd.f32 %v631, %v882
      %884 = vmatmul.bf16.gmra.mxu0 %v828
      %v885 = vpop.f32.mrf.mxu0
      %v886 = vadd.f32 %v634, %v885
      %v887 = vpop.f32.mrf.mxu0
      %v888 = vadd.f32 %v636, %v887
      %889 = vmatmul.bf16.gmra.mxu0 %v831
      %v890 = vpop.f32.mrf.mxu0
      %v891 = vadd.f32 %v639, %v890
      %v892 = vpop.f32.mrf.mxu0
      %v893 = vadd.f32 %v641, %v892
      %894 = vdwg.mxu0
      %v895 = vpack.c.bf16 %v878, %v876
      %v896 = vpack.c.bf16 %v883, %v881
      %v897 = vpack.c.bf16 %v888, %v886
      %v898 = vpack.c.bf16 %v893, %v891
      %899 = vmatpush.bf16.msra.mxu0 0
      %900 = vmatpush.bf16.msra.mxu0 0
      %901 = vmatpush.bf16.msra.mxu0 0
      %902 = vmatpush.bf16.msra.mxu0 0
      %903 = vmatpush.bf16.msra.mxu0 %v898
      %904 = vmatpush.bf16.msra.mxu0 %v897
      %905 = vmatpush.bf16.msra.mxu0 %v896
      %906 = vmatpush.bf16.msra.mxu0 %v895
      %907 = vmatmul.bf16.gmra.mxu0 %v822
      %v908 = vpop.f32.mrf.mxu0
      %v909 = vadd.f32 %v624, %v908
      %v910 = vpop.f32.mrf.mxu0
      %v911 = vadd.f32 %v626, %v910
      %912 = vmatmul.bf16.gmra.mxu0 %v825
      %v913 = vpop.f32.mrf.mxu0
      %v914 = vadd.f32 %v629, %v913
      %v915 = vpop.f32.mrf.mxu0
      %v916 = vadd.f32 %v631, %v915
      %917 = vmatmul.bf16.gmra.mxu0 %v828
      %v918 = vpop.f32.mrf.mxu0
      %v919 = vadd.f32 %v634, %v918
      %v920 = vpop.f32.mrf.mxu0
      %v921 = vadd.f32 %v636, %v920
      %922 = vmatmul.bf16.gmra.mxu0 %v831
      %v923 = vpop.f32.mrf.mxu0
      %v924 = vadd.f32 %v639, %v923
      %v925 = vpop.f32.mrf.mxu0
      %v926 = vadd.f32 %v641, %v925
      %927 = vdwg.mxu0
      %v928 = vmul.f32 %v909, 0.9
      %v929 = vmul.f32 %v911, 0.9
      %v930 = vmul.f32 %v914, 0.9
      %v931 = vmul.f32 %v916, 0.9
      %v932 = vmul.f32 %v919, 0.9
      %v933 = vmul.f32 %v921, 0.9
      %v934 = vmul.f32 %v924, 0.9
      %v935 = vmul.f32 %v926, 0.9
      %v937 = vperm.slane %v263, 0
      %v939 = vadd.f32 %v928, %v937
      %v940 = vadd.f32 %v929, %v937
      %v941 = vadd.f32 %v930, %v937
      %v942 = vadd.f32 %v931, %v937
      %v943 = vadd.f32 %v932, %v937
      %v944 = vadd.f32 %v933, %v937
      %v945 = vadd.f32 %v934, %v937
      %v946 = vadd.f32 %v935, %v937
      %947 = vst [vmem:[%s245] sm:$0xff] %v939
      %948 = vst [vmem:[%s245 + $0x8] sm:$0xff] %v940
      %949 = vst [vmem:[%s245 + $0x10] sm:$0xff] %v941
      %950 = vst [vmem:[%s245 + $0x18] sm:$0xff] %v942
      %951 = vst [vmem:[%s245 + $0x20] sm:$0xff] %v943
      %952 = vst [vmem:[%s245 + $0x28] sm:$0xff] %v944
      %953 = vst [vmem:[%s245 + $0x30] sm:$0xff] %v945
      %954 = vst [vmem:[%s245 + $0x38] sm:$0xff] %v946
      %p955 = scmp.lt.s32.totalorder %s17, 3
      %s956 = scalar_select %p955, %s17, 3
      %s957 = smul.addr %s956, 8
      %s958 = smul.addr %s957, 8
      %s959 = scalar_lea.vmem %s5, %s958
      // Predicated region
      $region41: #{dense_gsdnef_conv.1} parent=39 // pred_check
        %p960 = pneg %p150
      $region42: #{dense_gsdnef_conv.1} parent=39 // pred_check_branch
        %962 = sbr.rel (%p960) target = $region44
      $region43: #{dense_gsdnef_conv.1} parent=39 // pred_region
        _
      $region44: #{dense_gsdnef_conv.1} parent=39 // pred_fallthru
        _
    $region40: #{dense_gsdnef_conv.1} parent=5 // pred_fallthru
      _
    %p963 = scmp.le.s32.totalorder 2, %s12
    // Predicated region
    $region45: #{dense_gsdnef_conv.1} parent=5 // pred_check
      %p964 = pneg %p963
    $region46: #{dense_gsdnef_conv.1} parent=5 // pred_check_branch
      %966 = sbr.rel (%p964) target = $region48
    $region47: #{dense_gsdnef_conv.1} parent=5 // pred_region
      %s967 = ssub.s32 %s12, 2
      // Predicated region
      $region49: #{dense_gsdnef_conv.1} parent=47 // pred_check
        %p968 = pneg %p156
      $region50: #{dense_gsdnef_conv.1} parent=47 // pred_check_branch
        %970 = sbr.rel (%p968) target = $region52
      $region51: #{dense_gsdnef_conv.1} parent=47 // pred_region
        %p971 = scmp.lt.s32.totalorder %s18, 3
        %s972 = scalar_select %p971, %s18, 3
        %s973 = smul.addr %s972, 8
        %s974 = smul.addr %s973, 8
        %s975 = scalar_lea.vmem %s5, %s974
      $region52: #{dense_gsdnef_conv.1} parent=47 // pred_fallthru
        _
    $region48: #{dense_gsdnef_conv.1} parent=5 // pred_fallthru
      _
  $region6: #{dense_gsdnef_conv.1} parent=0 // loop_footer
    %s16 = sadd.s32 1, %s12
  $region7: #{dense_gsdnef_conv.1} parent=0 // loop_footer_branch
    %11 = sbr.rel target = $region3
  $region8: #{dense_gsdnef_conv.1} parent=0 // loop_exit
    _

</llo_original>
